<compile_context>
chip_gen: v7x
topology: tpu7x:2x2x1
jax: 0.10.0
libtpu: 0.0.40
codegen_flags: <defaults>
</compile_context>

<pallas_src>
import functools

import jax
import jax.numpy as jnp
from jax import lax
from jax.experimental import pallas as pl
from jax.experimental.pallas import tpu as pltpu

TEMPERATURE = 0.7
INV_TEMPERATURE = 1.0 / TEMPERATURE
NORM_EPS = 1e-12      # torch.nn.functional.normalize default eps
GUMBEL_EPS = 1e-10    # sample_gumbel eps
LANE = 128
SUBLANE = 8


def _round_up(x, m):
    return (x + m - 1) // m * m


def _gumbel_from_uniform(u):
    return -jnp.log(-jnp.log(u + GUMBEL_EPS) + GUMBEL_EPS)


def _classifier_kernel(idx_ref, hidden_ref, pnt_ref, u_ref, out_ref, *, p_valid):
    """One TM-row tile of apply_classifier.

    idx_ref    : (TM, 1)        int32 tail indices for this tile
    hidden_ref : (N_pad, H)     node embeddings (resident across the grid)
    pnt_ref    : (H, P_pad)     pre-normalized, pre-transposed, lane-padded protos
    u_ref      : (TM, P_pad)    uniform [0,1) noise (-> gumbel)
    out_ref    : (TM, P_pad)    log_softmax output (padded cols are garbage, sliced off)
    """
    idx = idx_ref[...]
    hidden = hidden_ref[...].astype(jnp.float32)
    pnt = pnt_ref[...].astype(jnp.float32)
    g = _gumbel_from_uniform(u_ref[...].astype(jnp.float32))

    tm = idx.shape[0]
    n_pad = hidden.shape[0]
    p_pad = pnt.shape[1]

    # Fused gather: one-hot (TM, N_pad) @ hidden (N_pad, H) on the MXU (exact for
    # a 0/1 weight matrix).  MXU is otherwise <2% utilized at these dims.
    onehot = (lax.broadcasted_iota(jnp.int32, (tm, n_pad), 1) == idx).astype(jnp.float32)
    x = jnp.dot(onehot, hidden, preferred_element_type=jnp.float32)        # (TM, H)

    # compute_sim(type='cosine'): row-L2 normalize the gathered tails; prototypes
    # are already normalized (and transposed) in the wrapper.
    norm = jnp.sqrt(jnp.sum(x * x, axis=-1, keepdims=True))
    xn = x / jnp.maximum(norm, NORM_EPS)
    sims = jnp.dot(xn, pnt, preferred_element_type=jnp.float32)            # (TM, P_pad)

    # gumbel_softmax_sample (train, ys_are_probas=False):
    #   y = (logits + gumbel) / temperature ; out = log_softmax(y, axis=-1)
    y = (sims + g) * INV_TEMPERATURE
    lane = lax.broadcasted_iota(jnp.int32, (tm, p_pad), 1)
    y = jnp.where(lane < p_valid, y, -jnp.inf)    # mask padded columns pre-softmax
    y_max = jnp.max(y, axis=-1, keepdims=True)
    y_shift = y - y_max
    lse = jnp.log(jnp.sum(jnp.exp(y_shift), axis=-1, keepdims=True))
    out_ref[...] = (y_shift - lse).astype(out_ref.dtype)


def nbf_apply_classifier(hidden, tail_indices, proto_embedding, *,
                         gumbel_uniform=None, key=None, block_rows=256):
    """JAX wrapper for NBF.apply_classifier (use_mlp_classifier=False, shared=False).

    `gumbel_uniform` (n_tails, P): if given, used verbatim (bit-comparable with
    the torch semantics given the same uniform draw); otherwise drawn here from
    `key` (default PRNGKey(0)) — same math as sample_gumbel.
    """
    n_tails = int(tail_indices.shape[0])
    num_nodes, hdim = hidden.shape
    num_protos = proto_embedding.shape[0]

    if gumbel_uniform is None:
        if key is None:
            key = jax.random.PRNGKey(0)
        gumbel_uniform = jax.random.uniform(key, (n_tails, num_protos), jnp.float32)

    # Tile sizing: multiples of 8 sublanes; cap block_rows so double-buffered
    # (TM,1)+(TM,P_pad) input tiles + (TM,P_pad) output stay tiny vs the default
    # scoped VMEM limit (safe on v5e/v6e/v7x alike).
    p_pad = _round_up(num_protos, LANE)
    n_node_pad = _round_up(num_nodes, SUBLANE)
    tm = min(_round_up(block_rows, SUBLANE), _round_up(n_tails, SUBLANE))
    n_pad = _round_up(n_tails, tm)
    grid = (n_pad // tm,)

    # Hoisted one-shot prototype prep: L2-normalize rows, transpose to (H, P_pad),
    # zero-pad the lane axis -> lane-dense MXU operand and lane-dense output store.
    proto32 = proto_embedding.astype(jnp.float32)
    pnorm = jnp.sqrt(jnp.sum(proto32 * proto32, axis=-1, keepdims=True))
    pn = proto32 / jnp.maximum(pnorm, NORM_EPS)
    pnt = jnp.zeros((hdim, p_pad), jnp.float32).at[:, :num_protos].set(pn.T)

    hidden_p = jnp.zeros((n_node_pad, hdim), jnp.float32).at[:num_nodes, :].set(
        hidden.astype(jnp.float32))
    idx_p = jnp.zeros((n_pad, 1), jnp.int32).at[:n_tails, 0].set(
        tail_indices.astype(jnp.int32))
    # Padded noise entries filled with 0.5 (finite gumbel); padded rows/cols are
    # discarded by the final slice, padded columns are masked to -inf in-kernel.
    u_p = jnp.full((n_pad, p_pad), 0.5, jnp.float32).at[:n_tails, :num_protos].set(
        gumbel_uniform.astype(jnp.float32))

    kernel = functools.partial(_classifier_kernel, p_valid=num_protos)
    grid_spec = pltpu.PrefetchScalarGridSpec(
        num_scalar_prefetch=0,
        grid=grid,
        in_specs=[
            pl.BlockSpec((tm, 1), lambda i: (i, 0)),             # tail indices
            pl.BlockSpec((n_node_pad, hdim), lambda i: (0, 0)),   # hidden (resident)
            pl.BlockSpec((hdim, p_pad), lambda i: (0, 0)),        # normalized protos^T
            pl.BlockSpec((tm, p_pad), lambda i: (i, 0)),          # uniform noise
        ],
        out_specs=pl.BlockSpec((tm, p_pad), lambda i: (i, 0)),
    )
    out = pl.pallas_call(
        kernel,
        out_shape=jax.ShapeDtypeStruct((n_pad, p_pad), jnp.float32),
        grid_spec=grid_spec,
        compiler_params=pltpu.CompilerParams(dimension_semantics=("parallel",)),
    )(idx_p, hidden_p, pnt, u_p)

    return out[:n_tails, :num_protos]


def _reference(hidden, tail_indices, proto_embedding, gumbel_uniform):
    """Pure-jnp mirror of the PyTorch semantics, for a correctness check."""
    x = hidden[tail_indices]
    xn = x / jnp.maximum(jnp.linalg.norm(x, axis=-1, keepdims=True), NORM_EPS)
    pn = proto_embedding / jnp.maximum(
        jnp.linalg.norm(proto_embedding, axis=-1, keepdims=True), NORM_EPS)
    sims = jnp.einsum('nh,ph->np', xn, pn)
    g = -jnp.log(-jnp.log(gumbel_uniform + GUMBEL_EPS) + GUMBEL_EPS)
    return jax.nn.log_softmax((sims + g) / TEMPERATURE, axis=-1)


if __name__ == "__main__":
    # Module hyper-parameters (use_mlp_classifier=False => num_prototypes=num_relations).
    hidden_dim = 32
    num_relations = 18
    num_prototypes = num_relations
    num_nodes = 16
    n_tails = 8

    key = jax.random.PRNGKey(0)
    k_hidden, k_tails, k_proto, k_noise = jax.random.split(key, 4)

    hidden = jax.random.uniform(k_hidden, (num_nodes, hidden_dim), jnp.float32)
    tail_indices = jax.random.randint(k_tails, (n_tails,), 0, num_nodes)
    proto_embedding = jax.random.uniform(k_proto, (num_prototypes, hidden_dim), jnp.float32)
    gumbel_uniform = jax.random.uniform(k_noise, (n_tails, num_prototypes), jnp.float32)

    # TODO(synk): NBF.forward / NBFCluttr.propagate (graph message passing with
    # scatter_softmax / scatter_add over edge_index) raises NotImplementedError in
    # the reference module and needs a graph batch, so it is not kernelized here.
    # NOTE: at production scale, batch many classifier calls (stack along n_tails)
    # into one pallas_call; a single (8,18) call is dominated by launch overhead.

    # Path 1: explicit-noise path — bit-for-bit comparable to the torch semantics.
    out = nbf_apply_classifier(hidden, tail_indices, proto_embedding,
                               gumbel_uniform=gumbel_uniform)
    out = jax.block_until_ready(out)
    ref = _reference(hidden, tail_indices, proto_embedding, gumbel_uniform)
    assert out.shape == (n_tails, num_prototypes)
    assert jnp.allclose(out, ref, atol=1e-5, rtol=1e-5), float(jnp.max(jnp.abs(out - ref)))

    # Path 2: wrapper-drawn Gumbel noise (default path when no uniforms are given).
    out2 = nbf_apply_classifier(hidden, tail_indices, proto_embedding,
                                key=jax.random.PRNGKey(1234))
    out2 = jax.block_until_ready(out2)
    assert out2.shape == (n_tails, num_prototypes)
    assert bool(jnp.all(jnp.isfinite(out2)))
    row_sums = jnp.sum(jnp.exp(out2), axis=-1)          # valid log_softmax rows
    assert bool(jnp.allclose(row_sums, 1.0, atol=1e-4))

    print("KERNEL_OK")
</pallas_src>

<mosaic_0001>
module attributes {stable_mosaic.version = 11 : i64} {
  func.func @_classifier_kernel(%arg0: i32, %arg1: memref<8x1xi32, #tpu.memory_space<vmem>>, %arg2: memref<16x32xf32, #tpu.memory_space<vmem>>, %arg3: memref<32x128xf32, #tpu.memory_space<vmem>>, %arg4: memref<8x128xf32, #tpu.memory_space<vmem>>, %arg5: memref<8x128xf32, #tpu.memory_space<vmem>>) attributes {dimension_semantics = [#tpu.dimension_semantics<parallel>], iteration_bounds = array<i64: 1>, scalar_prefetch = 0 : i64, scratch_operands = 0 : i64, tpu.core_type = #tpu.core_type<tc>, window_params = [{transform_indices = @transform_0, window_bounds = array<i64: 8, 1>}, {pipeline_mode = #tpu.pipeline_mode<synchronous>, transform_indices = @transform_1, window_bounds = array<i64: 16, 32>}, {pipeline_mode = #tpu.pipeline_mode<synchronous>, transform_indices = @transform_2, window_bounds = array<i64: 32, 128>}, {transform_indices = @transform_3, window_bounds = array<i64: 8, 128>}, {transform_indices = @transform_4, window_bounds = array<i64: 8, 128>}]} {
    %c0 = arith.constant 0 : index
    %c0_0 = arith.constant 0 : index
    %0 = vector.load %arg1[%c0, %c0_0] : memref<8x1xi32, #tpu.memory_space<vmem>>, vector<8x1xi32>
    %c0_1 = arith.constant 0 : index
    %c0_2 = arith.constant 0 : index
    %1 = vector.load %arg2[%c0_1, %c0_2] : memref<16x32xf32, #tpu.memory_space<vmem>>, vector<16x32xf32>
    %c0_3 = arith.constant 0 : index
    %c0_4 = arith.constant 0 : index
    %2 = vector.load %arg3[%c0_3, %c0_4] : memref<32x128xf32, #tpu.memory_space<vmem>>, vector<32x128xf32>
    %c0_5 = arith.constant 0 : index
    %c0_6 = arith.constant 0 : index
    %3 = vector.load %arg4[%c0_5, %c0_6] : memref<8x128xf32, #tpu.memory_space<vmem>>, vector<8x128xf32>
    %cst = arith.constant 1.000000e-10 : f32
    %4 = vector.broadcast %cst : f32 to vector<8x128xf32>
    %5 = arith.addf %3, %4 : vector<8x128xf32>
    %6 = math.log %5 : vector<8x128xf32>
    %cst_7 = arith.constant 0.000000e+00 : f32
    %7 = vector.broadcast %cst_7 : f32 to vector<8x128xf32>
    %8 = arith.subf %7, %6 : vector<8x128xf32>
    %cst_8 = arith.constant 1.000000e-10 : f32
    %9 = vector.broadcast %cst_8 : f32 to vector<8x128xf32>
    %10 = arith.addf %8, %9 : vector<8x128xf32>
    %11 = math.log %10 : vector<8x128xf32>
    %cst_9 = arith.constant 0.000000e+00 : f32
    %12 = vector.broadcast %cst_9 : f32 to vector<8x128xf32>
    %13 = arith.subf %12, %11 : vector<8x128xf32>
    %14 = tpu.iota {dimensions = array<i32: 1>} : vector<8x16xi32>
    %15 = vector.broadcast %0 : vector<8x1xi32> to vector<8x16xi32>
    %16 = arith.cmpi eq, %14, %15 : vector<8x16xi32>
    %17 = arith.extui %16 : vector<8x16xi1> to vector<8x16xi32>
    %18 = arith.sitofp %17 : vector<8x16xi32> to vector<8x16xf32>
    %cst_10 = arith.constant dense<0.000000e+00> : vector<8x32xf32>
    %19 = tpu.matmul %18, %1, %cst_10 {dimension_numbers = #tpu.dot_dimension_numbers<[1], [0], [0], [1], [0, 0, 1, 1], [], []>} : vector<8x16xf32>, vector<16x32xf32>, vector<8x32xf32> -> vector<8x32xf32>
    %20 = arith.mulf %19, %19 : vector<8x32xf32>
    %cst_11 = arith.constant dense<0.000000e+00> : vector<8xf32>
    %21 = vector.multi_reduction <add>, %20, %cst_11 [1] : vector<8x32xf32> to vector<8xf32>
    %22 = vector.shape_cast %21 : vector<8xf32> to vector<8x1xf32>
    %23 = math.sqrt %22 : vector<8x1xf32>
    %cst_12 = arith.constant 9.99999996E-13 : f32
    %24 = vector.broadcast %cst_12 : f32 to vector<8x1xf32>
    %25 = arith.maximumf %23, %24 : vector<8x1xf32>
    %26 = vector.broadcast %25 : vector<8x1xf32> to vector<8x32xf32>
    %27 = arith.divf %19, %26 : vector<8x32xf32>
    %cst_13 = arith.constant dense<0.000000e+00> : vector<8x128xf32>
    %28 = tpu.matmul %27, %2, %cst_13 {dimension_numbers = #tpu.dot_dimension_numbers<[1], [0], [0], [1], [0, 0, 1, 1], [], []>} : vector<8x32xf32>, vector<32x128xf32>, vector<8x128xf32> -> vector<8x128xf32>
    %29 = arith.addf %28, %13 : vector<8x128xf32>
    %cst_14 = arith.constant 1.42857146 : f32
    %30 = vector.broadcast %cst_14 : f32 to vector<8x128xf32>
    %31 = arith.mulf %29, %30 : vector<8x128xf32>
    %32 = tpu.iota {dimensions = array<i32: 1>} : vector<8x128xi32>
    %c18_i32 = arith.constant 18 : i32
    %33 = vector.broadcast %c18_i32 : i32 to vector<8x128xi32>
    %34 = arith.cmpi slt, %32, %33 : vector<8x128xi32>
    %cst_15 = arith.constant 0xFF800000 : f32
    %35 = vector.broadcast %cst_15 : f32 to vector<8x128xf32>
    %36 = arith.select %34, %31, %35 : vector<8x128xi1>, vector<8x128xf32>
    %cst_16 = arith.constant dense<0xFF800000> : vector<8xf32>
    %37 = vector.multi_reduction <maximumf>, %36, %cst_16 [1] : vector<8x128xf32> to vector<8xf32>
    %38 = vector.shape_cast %37 : vector<8xf32> to vector<8x1xf32>
    %39 = vector.broadcast %38 : vector<8x1xf32> to vector<8x128xf32>
    %40 = arith.subf %36, %39 : vector<8x128xf32>
    %41 = math.exp %40 : vector<8x128xf32>
    %cst_17 = arith.constant dense<0.000000e+00> : vector<8xf32>
    %42 = vector.multi_reduction <add>, %41, %cst_17 [1] : vector<8x128xf32> to vector<8xf32>
    %43 = vector.shape_cast %42 : vector<8xf32> to vector<8x1xf32>
    %44 = math.log %43 : vector<8x1xf32>
    %45 = vector.broadcast %44 : vector<8x1xf32> to vector<8x128xf32>
    %46 = arith.subf %40, %45 : vector<8x128xf32>
    %c0_18 = arith.constant 0 : index
    %c0_19 = arith.constant 0 : index
    %47 = vector.load %arg5[%c0_18, %c0_19] : memref<8x128xf32, #tpu.memory_space<vmem>>, vector<8x128xf32>
    tpu.vector_store %arg5[%c0_18, %c0_19], %46 {strides = array<i32>} : memref<8x128xf32, #tpu.memory_space<vmem>>, vector<8x128xf32>,
    return
  }
  func.func @transform_0(%arg0: i32) -> (i32, i32) {
    %c0_i32 = arith.constant 0 : i32
    %c0_i32_0 = arith.constant 0 : i32
    return %arg0, %c0_i32 : i32, i32
  }
  func.func @transform_1(%arg0: i32) -> (i32, i32) {
    %c0_i32 = arith.constant 0 : i32
    %c0_i32_0 = arith.constant 0 : i32
    %c0_i32_1 = arith.constant 0 : i32
    return %c0_i32, %c0_i32_0 : i32, i32
  }
  func.func @transform_2(%arg0: i32) -> (i32, i32) {
    %c0_i32 = arith.constant 0 : i32
    %c0_i32_0 = arith.constant 0 : i32
    %c0_i32_1 = arith.constant 0 : i32
    return %c0_i32, %c0_i32_0 : i32, i32
  }
  func.func @transform_3(%arg0: i32) -> (i32, i32) {
    %c0_i32 = arith.constant 0 : i32
    %c0_i32_0 = arith.constant 0 : i32
    return %arg0, %c0_i32 : i32, i32
  }
  func.func @transform_4(%arg0: i32) -> (i32, i32) {
    %c0_i32 = arith.constant 0 : i32
    %c0_i32_0 = arith.constant 0 : i32
    return %arg0, %c0_i32 : i32, i32
  }
}

</mosaic_0001>

<llo_original>
// kernel: tpu_custom_call.1
$region0: #{tpu_custom_call.1}
  #allocation0 [shape = 'u32[]', space=smem, size = 0x4, offset = 0x4, fixed_abs, tag = 'smem constant byte address 0x4 - core index']
  #allocation1 [shape = 'u32[144,128]{1,0:T(1,128)}', space=vmem, size = 0x12000, scoped, tag = 'internal scratch']
  %s0 = inlined_call_operand.vmem [shape: s32[8,1], index: 0, kind: input, shape index: {}]
  %s1 = inlined_call_operand.hbm [shape: f32[16,32], index: 1, kind: input, shape index: {}]
  %s2 = inlined_call_operand.hbm [shape: f32[32,128], index: 2, kind: input, shape index: {}]
  %s3 = inlined_call_operand.vmem [shape: f32[8,128], index: 3, kind: input, shape index: {}]
  %s4 = inlined_call_operand.hbm [shape: f32[8,128], index: 4, kind: output, shape index: {}]
  %s5 = sld [smem:[#allocation0]]
  $region34: #{tpu_custom_call.1} parent=0
    _
  %s7 = ssub.s32 1, %s5
  %s8 = scalar_select 0, %s7, %s5
  $region1: #{tpu_custom_call.1} parent=0
    #allocation2 [shape = 'u8[8192]{0}', space=vmem, size = 0x2000, scoped, tag = 'input window, operand 1, single buffered']
    #allocation3 [shape = 's32[1]{0}', space=sflag, size = 0x4, scoped, tag = 'scoped memory for tpu_custom_call.1']
    #allocation4 [shape = 's32[1]{0}', space=sflag, size = 0x4, scoped, tag = 'scoped memory for tpu_custom_call.1']
    #allocation5 [shape = 'u8[16384]{0}', space=vmem, size = 0x4000, scoped, tag = 'input window, operand 2, single buffered']
    #allocation6 [shape = 's32[1]{0}', space=sflag, size = 0x4, scoped, tag = 'scoped memory for tpu_custom_call.1']
    #allocation7 [shape = 'u8[4096]{0}', space=vmem, size = 0x1000, scoped, tag = 'output window, operand 0, single buffered']
    %9 = vsyncpa [#allocation3], 0
    %10 = vsyncpa [#allocation6], 0
    %11 = vsyncpa [#allocation4], 0
    // Predicated region
    $region2: #{tpu_custom_call.1} parent=1 // pred_check
      _
    $region3: #{tpu_custom_call.1} parent=1 // pred_check_branch
      %13 = sbr.rel (0) target = $region5
    $region4: #{tpu_custom_call.1} parent=1 // pred_region
      _
    $region5: #{tpu_custom_call.1} parent=1 // pred_fallthru
      _
    // Predicated region
    $region6: #{tpu_custom_call.1} parent=1 // pred_check
      _
    $region7: #{tpu_custom_call.1} parent=1 // pred_check_branch
      %15 = sbr.rel (0) target = $region9
    $region8: #{tpu_custom_call.1} parent=1 // pred_region
      %s17 = ssub.s32 256, 256
      %18 = vsyncadd [#allocation3], %s17
      %s19 = sshll.u32 [#allocation2], 4
      %s20 = int_to_ptr.vmem [resolvable:$true] %s19
      %25 = dma.hbm_to_vmem [thread:$0]  %s1, 256, %s20, [#allocation3], 128, 128, 8
    $region9: #{tpu_custom_call.1} parent=1 // pred_fallthru
      _
    // Predicated region
    $region10: #{tpu_custom_call.1} parent=1 // pred_check
      _
    $region11: #{tpu_custom_call.1} parent=1 // pred_check_branch
      %27 = sbr.rel (0) target = $region13
    $region12: #{tpu_custom_call.1} parent=1 // pred_region
      %s29 = ssub.s32 512, 512
      %30 = vsyncadd [#allocation6], %s29
      %s31 = sshll.u32 [#allocation5], 4
      %s32 = int_to_ptr.vmem [resolvable:$true] %s31
      %37 = dma.hbm_to_vmem [thread:$0]  %s2, 512, %s32, [#allocation6], 128, 128, 8
    $region13: #{tpu_custom_call.1} parent=1 // pred_fallthru
      _
    // Predicated region
    $region14: #{tpu_custom_call.1} parent=1 // pred_check
      _
    $region15: #{tpu_custom_call.1} parent=1 // pred_check_branch
      %39 = sbr.rel (0) target = $region17
    $region16: #{tpu_custom_call.1} parent=1 // pred_region
      _
    $region17: #{tpu_custom_call.1} parent=1 // pred_fallthru
      _
    // Predicated region
    $region18: #{tpu_custom_call.1} parent=1 // pred_check
      _
    $region19: #{tpu_custom_call.1} parent=1 // pred_check_branch
      %41 = sbr.rel (0) target = $region21
    $region20: #{tpu_custom_call.1} parent=1 // pred_region
      %42 = dma.done [#allocation3], 256
    $region21: #{tpu_custom_call.1} parent=1 // pred_fallthru
      _
    // Predicated region
    $region22: #{tpu_custom_call.1} parent=1 // pred_check
      _
    $region23: #{tpu_custom_call.1} parent=1 // pred_check_branch
      %44 = sbr.rel (0) target = $region25
    $region24: #{tpu_custom_call.1} parent=1 // pred_region
      %45 = dma.done [#allocation6], 512
    $region25: #{tpu_custom_call.1} parent=1 // pred_fallthru
      _
    %v46 = vld [vmem:[%s0] sm:$0xff]
    %v47 = vld [vmem:[#allocation2] sm:$0xff]
    %v48 = vld [vmem:[#allocation2 + $0x8] sm:$0xff]
    %v49 = vld [vmem:[#allocation5] sm:$0xff]
    %v50 = vld [vmem:[#allocation5 + $0x8] sm:$0xff]
    %v51 = vld [vmem:[#allocation5 + $0x10] sm:$0xff]
    %v52 = vld [vmem:[#allocation5 + $0x18] sm:$0xff]
    %v53 = vld [vmem:[%s3] sm:$0xff]
    %v54 = vadd.f32 %v53, 1e-10
    %v55 = vlog2.pop %v54
    %v56 = vmul.f32 %v55, 0.6931472
    %v57 = vsub.f32 0.0, %v56
    %v58 = vadd.f32 %v57, 1e-10
    %v59 = vlog2.pop %v58
    %v60 = vmul.f32 %v59, 0.6931472
    %v61 = vsub.f32 0.0, %v60
    %v62 = vlaneseq
    %v63 = vand.u32 %v62, 127
    %64 = vset.pattern.permute.xlu0 0
    %65 = vperm.xlu0 %64, %v46
    %v66 = vpop.permute.xlu0 %65
    %vm67 = vcmp.eq.s32.totalorder %v63, %v66
    %v68 = vsel %vm67, 1, 0
    %v69 = vcvt.s32.f32 %v68
    %vm70 = vcmask 130048
    %v72 = vsel %vm70, %v69, 0
    %74 = vmatprep.subr.mxu0 0.0
    %75 = vmatpush1.msra.mxu0 %v47
    %76 = vmatprep.subr.mxu0 0.0
    %77 = vmatpush1.msra.mxu0 %v48
    %78 = vmatprep.subr.mxu0 0.0
    %79 = vmatpush1.msra.mxu0 0.0
    %80 = vmatprep.subr.mxu0 0.0
    %81 = vmatpush1.msra.mxu0 0.0
    %82 = vmatprep.subr.mxu0 0.0
    %83 = vmatpush1.msra.mxu0 0.0
    %84 = vmatprep.subr.mxu0 0.0
    %85 = vmatpush1.msra.mxu0 0.0
    %86 = vmatprep.subr.mxu0 0.0
    %87 = vmatpush1.msra.mxu0 0.0
    %88 = vmatprep.subr.mxu0 0.0
    %89 = vmatpush1.msra.mxu0 0.0
    %90 = vmatprep.subr.mxu0 0.0
    %91 = vmatpush1.msra.mxu0 0.0
    %92 = vmatprep.subr.mxu0 0.0
    %93 = vmatpush1.msra.mxu0 0.0
    %94 = vmatprep.subr.mxu0 0.0
    %95 = vmatpush1.msra.mxu0 0.0
    %96 = vmatprep.subr.mxu0 0.0
    %97 = vmatpush1.msra.mxu0 0.0
    %98 = vmatprep.subr.mxu0 0.0
    %99 = vmatpush1.msra.mxu0 0.0
    %100 = vmatprep.subr.mxu0 0.0
    %101 = vmatpush1.msra.mxu0 0.0
    %102 = vmatprep.subr.mxu0 0.0
    %103 = vmatpush1.msra.mxu0 0.0
    %104 = vmatprep.subr.mxu0 0.0
    %105 = vmatpush1.msra.mxu0 0.0
    %106 = vmatprep.subr.mxu0 0.0
    %107 = vmatpush1.msra.mxu0 0.0
    %108 = vmatprep.subr.mxu0 0.0
    %109 = vmatpush1.msra.mxu0 0.0
    %110 = vmatprep.subr.mxu0 0.0
    %111 = vmatpush1.msra.mxu0 0.0
    %112 = vmatprep.subr.mxu0 0.0
    %113 = vmatpush1.msra.mxu0 0.0
    %114 = vmatprep.subr.mxu0 0.0
    %115 = vmatpush1.msra.mxu0 0.0
    %116 = vmatprep.subr.mxu0 0.0
    %117 = vmatpush1.msra.mxu0 0.0
    %118 = vmatprep.subr.mxu0 0.0
    %119 = vmatpush1.msra.mxu0 0.0
    %120 = vmatprep.subr.mxu0 0.0
    %121 = vmatpush1.msra.mxu0 0.0
    %122 = vmatprep.subr.mxu0 0.0
    %123 = vmatpush1.msra.mxu0 0.0
    %124 = vmatprep.subr.mxu0 0.0
    %125 = vmatpush1.msra.mxu0 0.0
    %126 = vmatprep.subr.mxu0 0.0
    %127 = vmatpush1.msra.mxu0 0.0
    %128 = vmatprep.subr.mxu0 0.0
    %129 = vmatpush1.msra.mxu0 0.0
    %130 = vmatprep.subr.mxu0 0.0
    %131 = vmatpush1.msra.mxu0 0.0
    %132 = vmatprep.subr.mxu0 0.0
    %133 = vmatpush1.msra.mxu0 0.0
    %134 = vmatprep.subr.mxu0 0.0
    %135 = vmatpush1.msra.mxu0 0.0
    %136 = vmatprep.subr.mxu0 0.0
    %137 = vmatpush1.msra.mxu0 0.0
    %138 = vmatprep.mubr.f32.mxu0 0.0
    %139 = vmatmul.mubr.f32.gmra.mrb[0].mxu0 %v72
    %v140 = vpop.f32.mrb[0].mxu0
    %v141 = vadd.f32 0.0, %v140
    %v142 = vpop.f32.mrb[0].mxu0
    %143 = vdwg.mxu0
    %v144 = vmul.f32 %v141, %v141
    %vm145 = vcmask 261120
    %v146 = vsel %vm145, %v144, 0.0
    %147 = vadd.xlane.f32.xlu0 %v146
    %v148 = vpop.xlane.xlu0 %147
    %v149 = vrsqrt.pop %v148
    %v150 = vmul.f32 %v148, %v149
    %vm151 = vcmp.eq.f32.partialorder %v148, inf
    %v152 = vsel %vm151, %v148, %v150
    %vm153 = vcmp.eq.f32.partialorder %v148, 0.0
    %v154 = vand.u32 %v148, 2147483648
    %v155 = vsel %vm153, %v154, %v152
    %v156 = vmax.f32 %v155, 1e-12
    %v157 = vrcp.pop %v156
    %v158 = vmul.f32 %v141, %v157
    %v160 = vsel %vm145, %v158, 0
    %162 = vmatprep.subr.mxu0 0.0
    %163 = vmatpush1.msra.mxu0 %v49
    %164 = vmatprep.subr.mxu0 0.0
    %165 = vmatpush1.msra.mxu0 %v50
    %166 = vmatprep.subr.mxu0 0.0
    %167 = vmatpush1.msra.mxu0 %v51
    %168 = vmatprep.subr.mxu0 0.0
    %169 = vmatpush1.msra.mxu0 %v52
    %170 = vmatprep.subr.mxu0 0.0
    %171 = vmatpush1.msra.mxu0 0.0
    %172 = vmatprep.subr.mxu0 0.0
    %173 = vmatpush1.msra.mxu0 0.0
    %174 = vmatprep.subr.mxu0 0.0
    %175 = vmatpush1.msra.mxu0 0.0
    %176 = vmatprep.subr.mxu0 0.0
    %177 = vmatpush1.msra.mxu0 0.0
    %178 = vmatprep.subr.mxu0 0.0
    %179 = vmatpush1.msra.mxu0 0.0
    %180 = vmatprep.subr.mxu0 0.0
    %181 = vmatpush1.msra.mxu0 0.0
    %182 = vmatprep.subr.mxu0 0.0
    %183 = vmatpush1.msra.mxu0 0.0
    %184 = vmatprep.subr.mxu0 0.0
    %185 = vmatpush1.msra.mxu0 0.0
    %186 = vmatprep.subr.mxu0 0.0
    %187 = vmatpush1.msra.mxu0 0.0
    %188 = vmatprep.subr.mxu0 0.0
    %189 = vmatpush1.msra.mxu0 0.0
    %190 = vmatprep.subr.mxu0 0.0
    %191 = vmatpush1.msra.mxu0 0.0
    %192 = vmatprep.subr.mxu0 0.0
    %193 = vmatpush1.msra.mxu0 0.0
    %194 = vmatprep.subr.mxu0 0.0
    %195 = vmatpush1.msra.mxu0 0.0
    %196 = vmatprep.subr.mxu0 0.0
    %197 = vmatpush1.msra.mxu0 0.0
    %198 = vmatprep.subr.mxu0 0.0
    %199 = vmatpush1.msra.mxu0 0.0
    %200 = vmatprep.subr.mxu0 0.0
    %201 = vmatpush1.msra.mxu0 0.0
    %202 = vmatprep.subr.mxu0 0.0
    %203 = vmatpush1.msra.mxu0 0.0
    %204 = vmatprep.subr.mxu0 0.0
    %205 = vmatpush1.msra.mxu0 0.0
    %206 = vmatprep.subr.mxu0 0.0
    %207 = vmatpush1.msra.mxu0 0.0
    %208 = vmatprep.subr.mxu0 0.0
    %209 = vmatpush1.msra.mxu0 0.0
    %210 = vmatprep.subr.mxu0 0.0
    %211 = vmatpush1.msra.mxu0 0.0
    %212 = vmatprep.subr.mxu0 0.0
    %213 = vmatpush1.msra.mxu0 0.0
    %214 = vmatprep.subr.mxu0 0.0
    %215 = vmatpush1.msra.mxu0 0.0
    %216 = vmatprep.subr.mxu0 0.0
    %217 = vmatpush1.msra.mxu0 0.0
    %218 = vmatprep.subr.mxu0 0.0
    %219 = vmatpush1.msra.mxu0 0.0
    %220 = vmatprep.subr.mxu0 0.0
    %221 = vmatpush1.msra.mxu0 0.0
    %222 = vmatprep.subr.mxu0 0.0
    %223 = vmatpush1.msra.mxu0 0.0
    %224 = vmatprep.subr.mxu0 0.0
    %225 = vmatpush1.msra.mxu0 0.0
    %226 = vmatprep.mubr.f32.mxu0 0.0
    %227 = vmatmul.mubr.f32.gmra.mrb[0].mxu0 %v160
    %v228 = vpop.f32.mrb[0].mxu0
    %v229 = vadd.f32 %v61, %v228
    %v230 = vpop.f32.mrb[0].mxu0
    %231 = vdwg.mxu0
    %v232 = vmul.f32 %v229, 1.4285715
    %vm233 = vcmp.lt.s32.totalorder %v63, 18
    %v234 = vsel %vm233, %v232, -inf
    %235 = vmax.xlane.f32.xlu0 %v234
    %v236 = vpop.xlane.xlu0 %235
    %v237 = vsub.f32 %v234, %v236
    %v238 = vmul.f32 %v237, 1.442695
    %v239 = vpow.pop %v238
    %240 = vadd.xlane.f32.xlu0 %v239
    %v241 = vpop.xlane.xlu0 %240
    %v242 = vlog2.pop %v241
    %v243 = vmul.f32 %v242, 0.6931472
    %v244 = vsub.f32 %v237, %v243
    %245 = vst [vmem:[#allocation7] sm:$0xff] %v244
    // Predicated region
    $region26: #{tpu_custom_call.1} parent=1 // pred_check
      _
    $region27: #{tpu_custom_call.1} parent=1 // pred_check_branch
      %247 = sbr.rel (0) target = $region29
    $region28: #{tpu_custom_call.1} parent=1 // pred_region
      %s249 = ssub.s32 128, 128
      %250 = vsyncadd [#allocation4], %s249
      %s252 = sshll.u32 [#allocation7], 4
      %s253 = int_to_ptr.vmem [resolvable:$true] %s252
      %255 = dma.vmem_to_hbm [thread:$0]  %s253, 128, %s4, [#allocation4]
    $region29: #{tpu_custom_call.1} parent=1 // pred_fallthru
      _
    // Predicated region
    $region30: #{tpu_custom_call.1} parent=1 // pred_check
      _
    $region31: #{tpu_custom_call.1} parent=1 // pred_check_branch
      %257 = sbr.rel (0) target = $region33
    $region32: #{tpu_custom_call.1} parent=1 // pred_region
      %258 = dma.done [#allocation4], 128
    $region33: #{tpu_custom_call.1} parent=1 // pred_fallthru
      _
    %259 = vsyncpa [#allocation3], 1
    %260 = vsyncpa [#allocation6], 1
    %261 = vsyncpa [#allocation4], 1

</llo_original>
